<compile_context>
chip_gen: v7x
topology: tpu7x:2x2x1
jax: 0.10.0
libtpu: 0.0.40
codegen_flags: <defaults>
</compile_context>

<pallas_src>
import math

import jax
import jax.numpy as jnp
from jax import lax
from jax.experimental import pallas as pl
from jax.experimental.pallas import tpu as pltpu


# ----------------------------------------------------------------------------
# Kernel factory (closes over static shape parameters)
# ----------------------------------------------------------------------------
def _make_kernels(h, rows_per_step, n_valid_rows, needs_mask):
    """Build the two kernels for a given (H, batch_tile, padding) config."""

    def conv_stack(x_stack, w_ref, bias_row):
        # x_stack : (T*H, W*Cin)  -- T images stacked along the sublane axis
        # w_ref   : Ref (3, W*Cin, W*Cout) width-Toeplitz weights (kx, Cin and
        #           horizontal zero padding folded in)
        # Returns conv + bias, (T*H, W*Cout), fp32.
        y_top = jnp.dot(x_stack, w_ref[0], preferred_element_type=jnp.float32)  # ky=0
        y_mid = jnp.dot(x_stack, w_ref[1], preferred_element_type=jnp.float32)  # ky=1
        y_bot = jnp.dot(x_stack, w_ref[2], preferred_element_type=jnp.float32)  # ky=2
        rows, wcout = y_mid.shape
        in_row = lax.broadcasted_iota(jnp.int32, (rows, wcout), 0) % h
        # Output row r needs y_top[r-1] + y_mid[r] + y_bot[r+1]; vertical zero
        # padding (and cross-image bleed in the stacked layout) is handled by
        # masking the rows at the image boundaries.  roll lives on the XLU,
        # the select on the VPU -- both overlap with the MXU dots above.
        y_top = jnp.where(in_row == 0, 0.0, pltpu.roll(y_top, 1, axis=0))
        y_bot = jnp.where(in_row == h - 1, 0.0,
                          pltpu.roll(y_bot, rows - 1, axis=0))  # == shift -1
        return y_top + y_mid + y_bot + bias_row

    def conv_stats_kernel(x_ref, w_ref, bias_ref, sum_ref, ssq_ref):
        # x_ref: (T*H, W*Cin); sum_ref / ssq_ref: (1, 1, W*Cout) per-step partials.
        conv = conv_stack(x_ref[...], w_ref, bias_ref[...])
        if needs_mask:  # static python bool; only traced when N was padded
            rows, wcout = conv.shape
            grow = (pl.program_id(0) * rows_per_step
                    + lax.broadcasted_iota(jnp.int32, (rows, wcout), 0))
            conv = jnp.where(grow < n_valid_rows, conv, 0.0)
        sum_ref[0] = jnp.sum(conv, axis=0, keepdims=True)
        ssq_ref[0] = jnp.sum(conv * conv, axis=0, keepdims=True)

    def conv_bn_relu_kernel(x_ref, w_ref, bias_ref, scale_ref, shift_ref, out_ref):
        # Recompute conv (flash-norm style) + fused BN apply + ReLU.
        conv = conv_stack(x_ref[...], w_ref, bias_ref[...])
        out_ref[...] = jnp.maximum(conv * scale_ref[...] + shift_ref[...],
                                   0.0).astype(out_ref.dtype)

    return conv_stats_kernel, conv_bn_relu_kernel


# ----------------------------------------------------------------------------
# Wrapper-side constant construction (tiny arrays, traced once)
# ----------------------------------------------------------------------------
def _toeplitz_weights(w_oihw, width):
    """(3, W*Cin, W*Cout) width-Toeplitz weights; horizontal pad folded in."""
    cout, cin, kh, kw = w_oihw.shape
    assert kh == 3 and kw == 3, "only kernel_size=3 supported"
    w_k = jnp.transpose(w_oihw.astype(jnp.float32), (2, 3, 1, 0))  # (ky,kx,Ci,Co)
    iw = jnp.arange(width)[:, None]
    ow = jnp.arange(width)[None, :]
    kx = iw - ow + 1                                               # (W, W)
    valid = (kx >= 0) & (kx <= 2)
    t = w_k[:, jnp.clip(kx, 0, 2), :, :]                           # (3,W,W,Ci,Co)
    t = jnp.where(valid[None, :, :, None, None], t, 0.0)
    t = jnp.transpose(t, (0, 1, 3, 2, 4))                          # (3,iw,Ci,ow,Co)
    return t.reshape(3, width * cin, width * cout)


def _pick_batch_tile(n, h, w, cin, cout, in_bytes, *,
                     min_steps=2, stream_budget_bytes=8 << 20):
    """Images per grid step.

    Biggest tile whose double-buffered in+out stream fits the budget, while
    (a) keeping at least `min_steps` grid steps so the "parallel" axis can be
        sharded across v7x's two TensorCores, and
    (b) keeping batch_tile*H a multiple of 8 (sublane tiling of the block).
    """
    per_img = 2 * h * w * (cin * in_bytes + cout * 4)      # double-buffered in+out
    t = max(1, stream_budget_bytes // per_img)
    if n >= min_steps:
        t = min(t, -(-n // min_steps))                     # => cdiv(n, t) >= min_steps
    align = 8 // math.gcd(h, 8)
    t = max(align, (t // align) * align)
    return int(t)


def _vmem_limit_bytes(batch_tile, h, w, cin, cout, in_bytes):
    """Explicit scoped-VMEM request: constants (double-buffered Toeplitz weight,
    bias/scale/shift rows) + double-buffered x/out stream + stats outputs,
    with headroom; capped at 48 MiB (safe on v7x's 64 MiB per-TC VMEM)."""
    wcin, wcout = w * cin, w * cout
    const = 2 * (3 * wcin * wcout * in_bytes + 3 * wcout * 4)
    stream = 2 * batch_tile * h * (wcin * in_bytes + wcout * 4)
    stats = 2 * 2 * wcout * 4
    need = const + stream + stats
    return int(min(max(need * 3 // 2 + (2 << 20), 16 << 20), 48 << 20))


# ----------------------------------------------------------------------------
# Forward passes
# ----------------------------------------------------------------------------
def block_forward_nhwc(x_nhwc, w_oihw, b, gamma, beta, eps=1e-5,
                       batch_tile=None, use_bf16_matmul=False):
    """Hot path: NHWC in / NHWC out, no transposes or pads beyond the optional
    batch padding (only free reshapes)."""
    n, h, w, cin = x_nhwc.shape
    cout = w_oihw.shape[0]
    wcin, wcout = w * cin, w * cout

    op_dtype = jnp.bfloat16 if use_bf16_matmul else jnp.float32
    in_bytes = 2 if use_bf16_matmul else 4

    if batch_tile is None:
        batch_tile = _pick_batch_tile(n, h, w, cin, cout, in_bytes)
    steps = -(-n // batch_tile)
    n_pad = steps * batch_tile
    rows_per_step = batch_tile * h
    needs_mask = (n_pad != n)

    # Lane-dense rows: (N*H, W*Cin), channels fastest (free reshape).
    x_rows = x_nhwc.reshape(n * h, wcin).astype(op_dtype)
    if needs_mask:
        x_rows = jnp.pad(x_rows, ((0, (n_pad - n) * h), (0, 0)))

    w_t = _toeplitz_weights(w_oihw, w).astype(op_dtype)            # (3,W*Cin,W*Cout)
    bias_row = jnp.tile(b.astype(jnp.float32), w).reshape(1, wcout)

    stats_kernel, apply_kernel = _make_kernels(h, rows_per_step, n * h, needs_mask)

    x_spec = pl.BlockSpec((rows_per_step, wcin), lambda i: (i, 0))
    # Constant-index operands: the pipeline only re-DMAs on index change, so
    # they are fetched once.
    w_spec = pl.BlockSpec((3, wcin, wcout), lambda i: (0, 0, 0))
    row_spec = pl.BlockSpec((1, wcout), lambda i: (0, 0))

    cparams = pltpu.CompilerParams(
        dimension_semantics=("parallel",),
        vmem_limit_bytes=_vmem_limit_bytes(batch_tile, h, w, cin, cout, in_bytes))

    # ---- Pass 1: conv -> per-step partial stats (pure parallel grid) -------
    sum_p, ssq_p = pl.pallas_call(
        stats_kernel,
        grid=(steps,),
        in_specs=[x_spec, w_spec, row_spec],
        out_specs=[pl.BlockSpec((1, 1, wcout), lambda i: (i, 0, 0)),
                   pl.BlockSpec((1, 1, wcout), lambda i: (i, 0, 0))],
        out_shape=[jax.ShapeDtypeStruct((steps, 1, wcout), jnp.float32),
                   jax.ShapeDtypeStruct((steps, 1, wcout), jnp.float32)],
        compiler_params=cparams,
    )(x_rows, w_t, bias_row)

    # ---- Finalize BatchNorm2d training-mode statistics (tiny, stays in XLA) -
    cnt = float(n * h * w)
    s_c = jnp.sum(sum_p.reshape(-1, cout), axis=0)                 # (Cout,)
    q_c = jnp.sum(ssq_p.reshape(-1, cout), axis=0)
    mean = s_c / cnt
    var = jnp.maximum(q_c / cnt - mean * mean, 0.0)                # biased var
    scale_c = gamma.astype(jnp.float32) / jnp.sqrt(var + eps)
    shift_c = beta.astype(jnp.float32) - mean * scale_c
    scale_row = jnp.tile(scale_c, w).reshape(1, wcout)
    shift_row = jnp.tile(shift_c, w).reshape(1, wcout)

    # ---- Pass 2: recompute conv + fused BN + ReLU (conv never hits HBM) ----
    out_rows = pl.pallas_call(
        apply_kernel,
        grid=(steps,),
        in_specs=[x_spec, w_spec, row_spec, row_spec, row_spec],
        out_specs=pl.BlockSpec((rows_per_step, wcout), lambda i: (i, 0)),
        out_shape=jax.ShapeDtypeStruct((n_pad * h, wcout), jnp.float32),
        compiler_params=cparams,
    )(x_rows, w_t, bias_row, scale_row, shift_row)

    out_rows = out_rows[:n * h]                                    # drop batch pad
    return out_rows.reshape(n, h, w, cout)                         # free reshape


def block_forward(x_nchw, w_oihw, b, gamma, beta, eps=1e-5, use_bf16_matmul=False):
    """NCHW adapter for PyTorch parity. The transposes below are interface
    glue only; keep the surrounding model in NHWC and call block_forward_nhwc
    directly to avoid them."""
    x_nhwc = jnp.transpose(x_nchw, (0, 2, 3, 1))
    out_nhwc = block_forward_nhwc(x_nhwc, w_oihw, b, gamma, beta, eps=eps,
                                  use_bf16_matmul=use_bf16_matmul)
    return jnp.transpose(out_nhwc, (0, 3, 1, 2))


# ----------------------------------------------------------------------------
# Pure-JAX reference (for correctness check)
# ----------------------------------------------------------------------------
def block_reference(x_nchw, w_oihw, b, gamma, beta, eps=1e-5):
    y = lax.conv_general_dilated(
        x_nchw, w_oihw, window_strides=(1, 1), padding=((1, 1), (1, 1)),
        dimension_numbers=("NCHW", "OIHW", "NCHW"))
    y = y + b[None, :, None, None]
    mean = y.mean(axis=(0, 2, 3))
    var = y.var(axis=(0, 2, 3))                      # biased, like PyTorch BN train
    yn = (y - mean[None, :, None, None]) / jnp.sqrt(var[None, :, None, None] + eps)
    return jnp.maximum(yn * gamma[None, :, None, None] + beta[None, :, None, None], 0.0)


if __name__ == "__main__":
    N, Cin, Cout, H, W = 2, 4, 8, 16, 16
    key = jax.random.PRNGKey(0)
    kx, kw, kb, kg, kbe = jax.random.split(key, 5)

    x = jax.random.normal(kx, (N, Cin, H, W), dtype=jnp.float32)
    w = 0.1 * jax.random.normal(kw, (Cout, Cin, 3, 3), dtype=jnp.float32)
    b = 0.1 * jax.random.normal(kb, (Cout,), dtype=jnp.float32)
    gamma = 1.0 + 0.1 * jax.random.normal(kg, (Cout,), dtype=jnp.float32)
    beta = 0.1 * jax.random.normal(kbe, (Cout,), dtype=jnp.float32)

    out = jax.block_until_ready(block_forward(x, w, b, gamma, beta))
    ref = jax.block_until_ready(block_reference(x, w, b, gamma, beta))

    assert out.shape == (N, Cout, H, W), out.shape
    err = float(jnp.max(jnp.abs(out - ref)))
    assert jnp.allclose(out, ref, atol=1e-4, rtol=1e-4), err
    print("KERNEL_OK")
</pallas_src>

<mosaic_0001>
module attributes {stable_mosaic.version = 11 : i64} {
  func.func @conv_stats_kernel(%arg0: i32, %arg1: memref<16x64xf32, #tpu.memory_space<vmem>>, %arg2: memref<3x64x128xf32, #tpu.memory_space<vmem>>, %arg3: memref<1x128xf32, #tpu.memory_space<vmem>>, %arg4: memref<1x1x128xf32, #tpu.memory_space<vmem>>, %arg5: memref<1x1x128xf32, #tpu.memory_space<vmem>>) attributes {dimension_semantics = [#tpu.dimension_semantics<parallel>], iteration_bounds = array<i64: 2>, scalar_prefetch = 0 : i64, scratch_operands = 0 : i64, tpu.core_type = #tpu.core_type<tc>, window_params = [{transform_indices = @transform_0, window_bounds = array<i64: 16, 64>}, {pipeline_mode = #tpu.pipeline_mode<synchronous>, transform_indices = @transform_1, window_bounds = array<i64: 3, 64, 128>}, {pipeline_mode = #tpu.pipeline_mode<synchronous>, transform_indices = @transform_2, window_bounds = array<i64: 1, 128>}, {transform_indices = @transform_3, window_bounds = array<i64: 1, 1, 128>}, {transform_indices = @transform_4, window_bounds = array<i64: 1, 1, 128>}]} {
    %c0 = arith.constant 0 : index
    %c0_0 = arith.constant 0 : index
    %0 = vector.load %arg1[%c0, %c0_0] : memref<16x64xf32, #tpu.memory_space<vmem>>, vector<16x64xf32>
    %c0_1 = arith.constant 0 : index
    %c0_2 = arith.constant 0 : index
    %1 = vector.load %arg3[%c0_1, %c0_2] : memref<1x128xf32, #tpu.memory_space<vmem>>, vector<1x128xf32>
    %c0_3 = arith.constant 0 : index
    %c0_4 = arith.constant 0 : index
    %c0_5 = arith.constant 0 : index
    %2 = vector.load %arg2[%c0_3, %c0_4, %c0_5] : memref<3x64x128xf32, #tpu.memory_space<vmem>>, vector<1x64x128xf32>
    %3 = vector.shape_cast %2 : vector<1x64x128xf32> to vector<64x128xf32>
    %cst = arith.constant dense<0.000000e+00> : vector<16x128xf32>
    %4 = tpu.matmul %0, %3, %cst {dimension_numbers = #tpu.dot_dimension_numbers<[1], [0], [0], [1], [0, 0, 1, 1], [], []>} : vector<16x64xf32>, vector<64x128xf32>, vector<16x128xf32> -> vector<16x128xf32>
    %c1 = arith.constant 1 : index
    %c0_6 = arith.constant 0 : index
    %c0_7 = arith.constant 0 : index
    %5 = vector.load %arg2[%c1, %c0_6, %c0_7] : memref<3x64x128xf32, #tpu.memory_space<vmem>>, vector<1x64x128xf32>
    %6 = vector.shape_cast %5 : vector<1x64x128xf32> to vector<64x128xf32>
    %cst_8 = arith.constant dense<0.000000e+00> : vector<16x128xf32>
    %7 = tpu.matmul %0, %6, %cst_8 {dimension_numbers = #tpu.dot_dimension_numbers<[1], [0], [0], [1], [0, 0, 1, 1], [], []>} : vector<16x64xf32>, vector<64x128xf32>, vector<16x128xf32> -> vector<16x128xf32>
    %c2 = arith.constant 2 : index
    %c0_9 = arith.constant 0 : index
    %c0_10 = arith.constant 0 : index
    %8 = vector.load %arg2[%c2, %c0_9, %c0_10] : memref<3x64x128xf32, #tpu.memory_space<vmem>>, vector<1x64x128xf32>
    %9 = vector.shape_cast %8 : vector<1x64x128xf32> to vector<64x128xf32>
    %cst_11 = arith.constant dense<0.000000e+00> : vector<16x128xf32>
    %10 = tpu.matmul %0, %9, %cst_11 {dimension_numbers = #tpu.dot_dimension_numbers<[1], [0], [0], [1], [0, 0, 1, 1], [], []>} : vector<16x64xf32>, vector<64x128xf32>, vector<16x128xf32> -> vector<16x128xf32>
    %11 = tpu.iota {dimensions = array<i32: 0>} : vector<16x128xi32>
    %c16_i32 = arith.constant 16 : i32
    %c0_i32 = arith.constant 0 : i32
    %12 = arith.cmpi eq, %c16_i32, %c0_i32 : i32
    %c1_i32 = arith.constant 1 : i32
    %13 = arith.select %12, %c1_i32, %c16_i32 : i32
    %14 = vector.broadcast %13 : i32 to vector<16x128xi32>
    %15 = arith.remsi %11, %14 : vector<16x128xi32>
    %c0_i32_12 = arith.constant 0 : i32
    %16 = vector.broadcast %c0_i32_12 : i32 to vector<16x128xi32>
    %17 = arith.cmpi ne, %15, %16 : vector<16x128xi32>
    %c0_i32_13 = arith.constant 0 : i32
    %18 = vector.broadcast %c0_i32_13 : i32 to vector<16x128xi32>
    %19 = arith.cmpi slt, %15, %18 : vector<16x128xi32>
    %c0_i32_14 = arith.constant 0 : i32
    %20 = arith.cmpi slt, %13, %c0_i32_14 : i32
    %21 = vector.broadcast %20 : i1 to vector<16x128xi1>
    %22 = vector.broadcast %21 : vector<16x128xi1> to vector<16x128xi1>
    %23 = arith.xori %19, %22 : vector<16x128xi1>
    %24 = arith.andi %23, %17 : vector<16x128xi1>
    %25 = vector.broadcast %13 : i32 to vector<16x128xi32>
    %26 = arith.addi %15, %25 : vector<16x128xi32>
    %27 = arith.select %24, %26, %15 : vector<16x128xi1>, vector<16x128xi32>
    %c0_i32_15 = arith.constant 0 : i32
    %28 = vector.broadcast %c0_i32_15 : i32 to vector<16x128xi32>
    %29 = arith.cmpi eq, %27, %28 : vector<16x128xi32>
    %c1_i32_16 = arith.constant 1 : i32
    %30 = tpu.dynamic_rotate %4 by %c1_i32_16 dim 0 : vector<16x128xf32>, i32 -> vector<16x128xf32>
    %cst_17 = arith.constant 0.000000e+00 : f32
    %31 = vector.broadcast %cst_17 : f32 to vector<16x128xf32>
    %32 = arith.select %29, %31, %30 : vector<16x128xi1>, vector<16x128xf32>
    %c15_i32 = arith.constant 15 : i32
    %33 = vector.broadcast %c15_i32 : i32 to vector<16x128xi32>
    %34 = arith.cmpi eq, %27, %33 : vector<16x128xi32>
    %c15_i32_18 = arith.constant 15 : i32
    %35 = tpu.dynamic_rotate %10 by %c15_i32_18 dim 0 : vector<16x128xf32>, i32 -> vector<16x128xf32>
    %cst_19 = arith.constant 0.000000e+00 : f32
    %36 = vector.broadcast %cst_19 : f32 to vector<16x128xf32>
    %37 = arith.select %34, %36, %35 : vector<16x128xi1>, vector<16x128xf32>
    %38 = arith.addf %32, %7 : vector<16x128xf32>
    %39 = arith.addf %38, %37 : vector<16x128xf32>
    %40 = vector.broadcast %1 : vector<1x128xf32> to vector<16x128xf32>
    %41 = arith.addf %39, %40 : vector<16x128xf32>
    %cst_20 = arith.constant dense<0.000000e+00> : vector<128xf32>
    %42 = vector.multi_reduction <add>, %41, %cst_20 [0] : vector<16x128xf32> to vector<128xf32>
    %43 = vector.shape_cast %42 : vector<128xf32> to vector<1x128xf32>
    %c0_21 = arith.constant 0 : index
    %c0_22 = arith.constant 0 : index
    %c0_23 = arith.constant 0 : index
    %44 = vector.load %arg4[%c0_21, %c0_22, %c0_23] : memref<1x1x128xf32, #tpu.memory_space<vmem>>, vector<1x1x128xf32>
    %45 = vector.shape_cast %44 : vector<1x1x128xf32> to vector<1x128xf32>
    %46 = vector.shape_cast %43 : vector<1x128xf32> to vector<1x1x128xf32>
    tpu.vector_store %arg4[%c0_21, %c0_22, %c0_23], %46 {strides = array<i32>} : memref<1x1x128xf32, #tpu.memory_space<vmem>>, vector<1x1x128xf32>,
    %47 = arith.mulf %41, %41 : vector<16x128xf32>
    %cst_24 = arith.constant dense<0.000000e+00> : vector<128xf32>
    %48 = vector.multi_reduction <add>, %47, %cst_24 [0] : vector<16x128xf32> to vector<128xf32>
    %49 = vector.shape_cast %48 : vector<128xf32> to vector<1x128xf32>
    %c0_25 = arith.constant 0 : index
    %c0_26 = arith.constant 0 : index
    %c0_27 = arith.constant 0 : index
    %50 = vector.load %arg5[%c0_25, %c0_26, %c0_27] : memref<1x1x128xf32, #tpu.memory_space<vmem>>, vector<1x1x128xf32>
    %51 = vector.shape_cast %50 : vector<1x1x128xf32> to vector<1x128xf32>
    %52 = vector.shape_cast %49 : vector<1x128xf32> to vector<1x1x128xf32>
    tpu.vector_store %arg5[%c0_25, %c0_26, %c0_27], %52 {strides = array<i32>} : memref<1x1x128xf32, #tpu.memory_space<vmem>>, vector<1x1x128xf32>,
    return
  }
  func.func @transform_0(%arg0: i32) -> (i32, i32) {
    %c0_i32 = arith.constant 0 : i32
    %c0_i32_0 = arith.constant 0 : i32
    return %arg0, %c0_i32 : i32, i32
  }
  func.func @transform_1(%arg0: i32) -> (i32, i32, i32) {
    %c0_i32 = arith.constant 0 : i32
    %c0_i32_0 = arith.constant 0 : i32
    %c0_i32_1 = arith.constant 0 : i32
    %c0_i32_2 = arith.constant 0 : i32
    return %c0_i32, %c0_i32_0, %c0_i32_1 : i32, i32, i32
  }
  func.func @transform_2(%arg0: i32) -> (i32, i32) {
    %c0_i32 = arith.constant 0 : i32
    %c0_i32_0 = arith.constant 0 : i32
    %c0_i32_1 = arith.constant 0 : i32
    return %c0_i32, %c0_i32_0 : i32, i32
  }
  func.func @transform_3(%arg0: i32) -> (i32, i32, i32) {
    %c0_i32 = arith.constant 0 : i32
    %c0_i32_0 = arith.constant 0 : i32
    %c0_i32_1 = arith.constant 0 : i32
    return %arg0, %c0_i32, %c0_i32_0 : i32, i32, i32
  }
  func.func @transform_4(%arg0: i32) -> (i32, i32, i32) {
    %c0_i32 = arith.constant 0 : i32
    %c0_i32_0 = arith.constant 0 : i32
    %c0_i32_1 = arith.constant 0 : i32
    return %arg0, %c0_i32, %c0_i32_0 : i32, i32, i32
  }
}

</mosaic_0001>

<llo_original>
// kernel: tpu_custom_call.1
$region0: #{tpu_custom_call.1}
  #allocation0 [shape = 'u32[]', space=smem, size = 0x4, offset = 0x4, fixed_abs, tag = 'smem constant byte address 0x4 - core index']
  #allocation1 [shape = 'u32[144,128]{1,0:T(1,128)}', space=vmem, size = 0x12000, scoped, tag = 'internal scratch']
  %s0 = inlined_call_operand.hbm [shape: f32[32,64], index: 0, kind: input, shape index: {}]
  %s1 = inlined_call_operand.hbm [shape: f32[3,64,128], index: 1, kind: input, shape index: {}]
  %s2 = inlined_call_operand.vmem [shape: f32[1,128], index: 2, kind: input, shape index: {}]
  %s3 = inlined_call_operand.hbm [shape: f32[2,1,128], index: 3, kind: output, shape index: {0}]
  %s4 = inlined_call_operand.hbm [shape: f32[2,1,128], index: 4, kind: output, shape index: {1}]
  %5 = xla_tuple %s3, %s4
  %s6 = sld [smem:[#allocation0]]
  $region61: #{tpu_custom_call.1} parent=0
    _
  %s8 = ssub.s32 1, %s6
  %s9 = scalar_select 0, %s8, %s6
  $region1: #{tpu_custom_call.1} parent=0
    #allocation2 [shape = 'u8[16384]{0}', space=vmem, size = 0x4000, scoped, tag = 'input window, operand 0']
    #allocation3 [shape = 's32[2]{0}', space=sflag, size = 0x8, scoped, tag = 'scoped memory for tpu_custom_call.1']
    #allocation4 [shape = 's32[2]{0}', space=sflag, size = 0x8, scoped, tag = 'scoped memory for tpu_custom_call.1']
    #allocation5 [shape = 'u8[98304]{0}', space=vmem, size = 0x18000, scoped, tag = 'input window, operand 1, single buffered']
    #allocation6 [shape = 's32[1]{0}', space=sflag, size = 0x4, scoped, tag = 'scoped memory for tpu_custom_call.1']
    #allocation7 [shape = 'u8[1024]{0}', space=vmem, size = 0x400, scoped, tag = 'output window, operand 0']
    #allocation8 [shape = 'u8[1024]{0}', space=vmem, size = 0x400, scoped, tag = 'output window, operand 1']
    #allocation9 [shape = 's32[2]{0}', space=sflag, size = 0x8, scoped, tag = 'scoped memory for tpu_custom_call.1']
    %10 = vsyncpa [#allocation3], 0
    %s11 = scalar_lea.sflag [#allocation3], 1
    %12 = vsyncpa %s11, 0
    %13 = vsyncpa [#allocation6], 0
    %14 = vsyncpa [#allocation4], 0
    %s15 = scalar_lea.sflag [#allocation4], 1
    %16 = vsyncpa %s15, 0
    %17 = vsyncpa [#allocation9], 0
    %s18 = scalar_lea.sflag [#allocation9], 1
    %19 = vsyncpa %s18, 0
    loop: start=0, step=1, limit=4
    $region2: #{tpu_custom_call.1} parent=1 // loop_pre_header
      _
    $region3: #{tpu_custom_call.1} parent=1 // loop_header
      %s21 = sphi 0, %s25
      %p22 = scmp.ge.s32.totalorder %s21, 4
      %s31 = sphi 0, %s33
      %s34 = sphi 0, %s31
      %s35 = sphi 0, %s34
      %s51 = sphi 0, %s35
      %s55 = sphi 0, %s55
      %s57 = sphi 0, %s55
      %s58 = sphi 0, %s57
      %s72 = sphi 0, %s58
      %s76 = sphi 0, %s76
      %s78 = sphi 0, %s76
      %s79 = sphi 0, %s78
      %s93 = sphi 0, %s79
      %s99 = sphi 0, %s101
      %s102 = sphi 0, %s99
      %s103 = sphi 0, %s102
      %s119 = sphi 0, %s103
      %s125 = sphi 0, %s127
      %s128 = sphi 0, %s125
      %s129 = sphi 0, %s128
      %s145 = sphi 0, %s129
    $region4: #{tpu_custom_call.1} parent=1 // loop_header_branch
      %24 = sbr.rel (%p22) target = $region8
    $region5: #{tpu_custom_call.1} parent=1 // loop_body
      %s26 = ssub.s32 %s21, 1
      %s27 = ssub.s32 %s21, 2
      %s28 = sadd.s32 %s21, 1
      %s29 = ssub.s32 %s21, %s28
      %p30 = scmp.eq.s32.totalorder %s29, 0
      %s32 = sadd.s32 %s31, 1
      %s33 = scalar_select %p30, %s31, %s32
      %p36 = pneg %p30
      %p37 = scmp.eq.s32.totalorder %s21, 1
      %p38 = por %p36, %p37
      %p39 = scmp.ne.s32.totalorder %s31, %s34
      %p40 = scmp.eq.s32.totalorder %s21, 0
      %p41 = por %p39, %p40
      %p42 = scmp.ne.s32.totalorder %s31, %s34
      %p43 = scmp.eq.s32.totalorder %s26, 1
      %p44 = por %p42, %p43
      %p45 = scmp.ne.s32.totalorder %s34, %s35
      %p46 = scmp.eq.s32.totalorder %s26, 0
      %p47 = por %p45, %p46
      %p48 = scmp.ne.s32.totalorder %s34, %s35
      %p49 = scmp.eq.s32.totalorder %s27, 1
      %p50 = por %p48, %p49
      %p52 = scmp.ne.s32.totalorder %s35, %s51
      %p53 = scmp.eq.s32.totalorder %s27, 0
      %p54 = por %p52, %p53
      %s56 = sadd.s32 %s55, 1
      %p59 = scmp.eq.s32.totalorder %s21, 1
      %p60 = scmp.ne.s32.totalorder %s55, %s57
      %p61 = scmp.eq.s32.totalorder %s21, 0
      %p62 = por %p60, %p61
      %p63 = scmp.ne.s32.totalorder %s55, %s57
      %p64 = scmp.eq.s32.totalorder %s26, 1
      %p65 = por %p63, %p64
      %p66 = scmp.ne.s32.totalorder %s57, %s58
      %p67 = scmp.eq.s32.totalorder %s26, 0
      %p68 = por %p66, %p67
      %p69 = scmp.ne.s32.totalorder %s57, %s58
      %p70 = scmp.eq.s32.totalorder %s27, 1
      %p71 = por %p69, %p70
      %p73 = scmp.ne.s32.totalorder %s58, %s72
      %p74 = scmp.eq.s32.totalorder %s27, 0
      %p75 = por %p73, %p74
      %s77 = sadd.s32 %s76, 1
      %p80 = scmp.eq.s32.totalorder %s21, 1
      %p81 = scmp.ne.s32.totalorder %s76, %s78
      %p82 = scmp.eq.s32.totalorder %s21, 0
      %p83 = por %p81, %p82
      %p84 = scmp.ne.s32.totalorder %s76, %s78
      %p85 = scmp.eq.s32.totalorder %s26, 1
      %p86 = por %p84, %p85
      %p87 = scmp.ne.s32.totalorder %s78, %s79
      %p88 = scmp.eq.s32.totalorder %s26, 0
      %p89 = por %p87, %p88
      %p90 = scmp.ne.s32.totalorder %s78, %s79
      %p91 = scmp.eq.s32.totalorder %s27, 1
      %p92 = por %p90, %p91
      %p94 = scmp.ne.s32.totalorder %s79, %s93
      %p95 = scmp.eq.s32.totalorder %s27, 0
      %p96 = por %p94, %p95
      %s97 = ssub.s32 %s21, %s28
      %p98 = scmp.eq.s32.totalorder %s97, 0
      %s100 = sadd.s32 %s99, 1
      %s101 = scalar_select %p98, %s99, %s100
      %p104 = pneg %p98
      %p105 = scmp.eq.s32.totalorder %s21, 1
      %p106 = por %p104, %p105
      %p107 = scmp.ne.s32.totalorder %s99, %s102
      %p108 = scmp.eq.s32.totalorder %s21, 0
      %p109 = por %p107, %p108
      %p110 = scmp.ne.s32.totalorder %s99, %s102
      %p111 = scmp.eq.s32.totalorder %s26, 1
      %p112 = por %p110, %p111
      %p113 = scmp.ne.s32.totalorder %s102, %s103
      %p114 = scmp.eq.s32.totalorder %s26, 0
      %p115 = por %p113, %p114
      %p116 = scmp.ne.s32.totalorder %s102, %s103
      %p117 = scmp.eq.s32.totalorder %s27, 1
      %p118 = por %p116, %p117
      %p120 = scmp.ne.s32.totalorder %s103, %s119
      %p121 = scmp.eq.s32.totalorder %s27, 0
      %p122 = por %p120, %p121
      %s123 = ssub.s32 %s21, %s28
      %p124 = scmp.eq.s32.totalorder %s123, 0
      %s126 = sadd.s32 %s125, 1
      %s127 = scalar_select %p124, %s125, %s126
      %p130 = pneg %p124
      %p131 = scmp.eq.s32.totalorder %s21, 1
      %p132 = por %p130, %p131
      %p133 = scmp.ne.s32.totalorder %s125, %s128
      %p134 = scmp.eq.s32.totalorder %s21, 0
      %p135 = por %p133, %p134
      %p136 = scmp.ne.s32.totalorder %s125, %s128
      %p137 = scmp.eq.s32.totalorder %s26, 1
      %p138 = por %p136, %p137
      %p139 = scmp.ne.s32.totalorder %s128, %s129
      %p140 = scmp.eq.s32.totalorder %s26, 0
      %p141 = por %p139, %p140
      %p142 = scmp.ne.s32.totalorder %s128, %s129
      %p143 = scmp.eq.s32.totalorder %s27, 1
      %p144 = por %p142, %p143
      %p146 = scmp.ne.s32.totalorder %s129, %s145
      %p147 = scmp.eq.s32.totalorder %s27, 0
      %p148 = por %p146, %p147
      %p149 = scmp.le.s32.totalorder 1, %s21
      %p150 = scmp.lt.s32.totalorder %s21, 3
      %p151 = pnand %p149, %p150
      %p152 = pneg %p151
      // Predicated region
      $region9: #{tpu_custom_call.1} parent=5 // pred_check
        _
      $region10: #{tpu_custom_call.1} parent=5 // pred_check_branch
        %154 = sbr.rel (%p151) target = $region12
      $region11: #{tpu_custom_call.1} parent=5 // pred_region
        %s155 = ssub.s32 %s21, 1
        // Predicated region
        $region13: #{tpu_custom_call.1} parent=11 // pred_check
          %p156 = pneg %p68
        $region14: #{tpu_custom_call.1} parent=11 // pred_check_branch
          %158 = sbr.rel (%p156) target = $region16
        $region15: #{tpu_custom_call.1} parent=11 // pred_region
          %s160 = ssub.s32 3072, 3072
          %161 = vsyncadd [#allocation6], %s160
          %s162 = sshll.u32 [#allocation5], 4
          %s163 = int_to_ptr.vmem [resolvable:$true] %s162
          %168 = dma.hbm_to_vmem [thread:$0]  %s1, 3072, %s163, [#allocation6], 128, 128, 8
        $region16: #{tpu_custom_call.1} parent=11 // pred_fallthru
          _
        // Predicated region
        $region17: #{tpu_custom_call.1} parent=11 // pred_check
          %p169 = pneg %p89
        $region18: #{tpu_custom_call.1} parent=11 // pred_check_branch
          %171 = sbr.rel (%p169) target = $region20
        $region19: #{tpu_custom_call.1} parent=11 // pred_region
          _
        $region20: #{tpu_custom_call.1} parent=11 // pred_fallthru
          _
      $region12: #{tpu_custom_call.1} parent=5 // pred_fallthru
        _
      %p172 = scmp.lt.s32.totalorder %s21, 2
      // Predicated region
      $region21: #{tpu_custom_call.1} parent=5 // pred_check
        %p173 = pneg %p172
      $region22: #{tpu_custom_call.1} parent=5 // pred_check_branch
        %175 = sbr.rel (%p173) target = $region24
      $region23: #{tpu_custom_call.1} parent=5 // pred_region
        // Predicated region
        $region25: #{tpu_custom_call.1} parent=23 // pred_check
          %p176 = pneg %p41
        $region26: #{tpu_custom_call.1} parent=23 // pred_check_branch
          %178 = sbr.rel (%p176) target = $region28
        $region27: #{tpu_custom_call.1} parent=23 // pred_region
          %s179 = sand.u32 %s31, 1
          %s180 = scalar_lea.sflag [#allocation3], %s179
          %s181 = sand.u32 %s31, 1
          %s182 = smul.addr %s181, 16
          %s183 = scalar_lea.vmem [#allocation2], %s182
          %s184 = smul.u32 2, %s21
          %s186 = ssub.s32 256, 256
          %187 = vsyncadd %s180, %s186
          %s188 = smul.addr %s184, 128
          %s189 = scalar_lea.hbm %s0, %s188
          %s190 = sshll.u32 %s183, 4
          %s191 = int_to_ptr.vmem [resolvable:$true] %s190
          %196 = dma.hbm_to_vmem [thread:$0]  %s189, 256, %s191, %s180, 128, 128, 8
        $region28: #{tpu_custom_call.1} parent=23 // pred_fallthru
          _
      $region24: #{tpu_custom_call.1} parent=5 // pred_fallthru
        _
      %p197 = scmp.le.s32.totalorder 1, %s21
      %p198 = scmp.lt.s32.totalorder %s21, 3
      %p199 = pnand %p197, %p198
      %p200 = pneg %p199
      // Predicated region
      $region29: #{tpu_custom_call.1} parent=5 // pred_check
        _
      $region30: #{tpu_custom_call.1} parent=5 // pred_check_branch
        %202 = sbr.rel (%p199) target = $region32
      $region31: #{tpu_custom_call.1} parent=5 // pred_region
        %s203 = ssub.s32 %s21, 1
        %s204 = sand.u32 %s34, 1
        %s205 = scalar_lea.sflag [#allocation3], %s204
        %s206 = sand.u32 %s34, 1
        %s207 = smul.addr %s206, 16
        %s208 = scalar_lea.vmem [#allocation2], %s207
        // Predicated region
        $region33: #{tpu_custom_call.1} parent=31 // pred_check
          %p209 = pneg %p47
        $region34: #{tpu_custom_call.1} parent=31 // pred_check_branch
          %211 = sbr.rel (%p209) target = $region36
        $region35: #{tpu_custom_call.1} parent=31 // pred_region
          %212 = dma.done %s205, 256
        $region36: #{tpu_custom_call.1} parent=31 // pred_fallthru
          _
        // Predicated region
        $region37: #{tpu_custom_call.1} parent=31 // pred_check
          %p213 = pneg %p68
        $region38: #{tpu_custom_call.1} parent=31 // pred_check_branch
          %215 = sbr.rel (%p213) target = $region40
        $region39: #{tpu_custom_call.1} parent=31 // pred_region
          %216 = dma.done [#allocation6], 3072
        $region40: #{tpu_custom_call.1} parent=31 // pred_fallthru
          _
        %s217 = sand.u32 %s34, 1
        %s218 = scalar_lea.sflag [#allocation3], %s217
        %s219 = sand.u32 %s34, 1
        %s220 = smul.addr %s219, 16
        %s221 = scalar_lea.vmem [#allocation2], %s220
        %p222 = pneg %p47
        %p223 = pneg %p44
        %p224 = pneg %p68
        %p225 = pneg %p65
        %p226 = pneg %p89
        %p227 = pneg %p86
        %p228 = pneg %p115
        %p229 = pneg %p112
        %s230 = sand.u32 %s102, 1
        %s231 = scalar_lea.sflag [#allocation4], %s230
        %s232 = sand.u32 %s102, 1
        %s233 = scalar_lea.vmem [#allocation7], %s232
        %p234 = pneg %p141
        %p235 = pneg %p138
        %s236 = sand.u32 %s128, 1
        %s237 = scalar_lea.sflag [#allocation9], %s236
        %s238 = sand.u32 %s128, 1
        %s239 = scalar_lea.vmem [#allocation8], %s238
        %s240 = smul.u32 2, %s26
        %v241 = vld [vmem:[%s208] sm:$0xff]
        %v242 = vld [vmem:[%s208 + $0x8] sm:$0xff]
        %v243 = vld [vmem:[%s2] sm:$0x1]
        %v244 = vld [vmem:[#allocation5] sm:$0xff]
        %v245 = vld [vmem:[#allocation5 + $0x8] sm:$0xff]
        %v246 = vld [vmem:[#allocation5 + $0x10] sm:$0xff]
        %v247 = vld [vmem:[#allocation5 + $0x18] sm:$0xff]
        %v248 = vld [vmem:[#allocation5 + $0x20] sm:$0xff]
        %v249 = vld [vmem:[#allocation5 + $0x28] sm:$0xff]
        %v250 = vld [vmem:[#allocation5 + $0x30] sm:$0xff]
        %v251 = vld [vmem:[#allocation5 + $0x38] sm:$0xff]
        %vm252 = vcmask 523264
        %v254 = vsel %vm252, %v241, 0
        %v257 = vsel %vm252, %v242, 0
        %259 = vmatprep.subr.mxu0 0.0
        %260 = vmatpush1.msra.mxu0 %v244
        %261 = vmatprep.subr.mxu0 0.0
        %262 = vmatpush1.msra.mxu0 %v245
        %263 = vmatprep.subr.mxu0 0.0
        %264 = vmatpush1.msra.mxu0 %v246
        %265 = vmatprep.subr.mxu0 0.0
        %266 = vmatpush1.msra.mxu0 %v247
        %267 = vmatprep.subr.mxu0 0.0
        %268 = vmatpush1.msra.mxu0 %v248
        %269 = vmatprep.subr.mxu0 0.0
        %270 = vmatpush1.msra.mxu0 %v249
        %271 = vmatprep.subr.mxu0 0.0
        %272 = vmatpush1.msra.mxu0 %v250
        %273 = vmatprep.subr.mxu0 0.0
        %274 = vmatpush1.msra.mxu0 %v251
        %275 = vmatprep.subr.mxu0 0.0
        %276 = vmatpush1.msra.mxu0 0.0
        %277 = vmatprep.subr.mxu0 0.0
        %278 = vmatpush1.msra.mxu0 0.0
        %279 = vmatprep.subr.mxu0 0.0
        %280 = vmatpush1.msra.mxu0 0.0
        %281 = vmatprep.subr.mxu0 0.0
        %282 = vmatpush1.msra.mxu0 0.0
        %283 = vmatprep.subr.mxu0 0.0
        %284 = vmatpush1.msra.mxu0 0.0
        %285 = vmatprep.subr.mxu0 0.0
        %286 = vmatpush1.msra.mxu0 0.0
        %287 = vmatprep.subr.mxu0 0.0
        %288 = vmatpush1.msra.mxu0 0.0
        %289 = vmatprep.subr.mxu0 0.0
        %290 = vmatpush1.msra.mxu0 0.0
        %291 = vmatprep.subr.mxu0 0.0
        %292 = vmatpush1.msra.mxu0 0.0
        %293 = vmatprep.subr.mxu0 0.0
        %294 = vmatpush1.msra.mxu0 0.0
        %295 = vmatprep.subr.mxu0 0.0
        %296 = vmatpush1.msra.mxu0 0.0
        %297 = vmatprep.subr.mxu0 0.0
        %298 = vmatpush1.msra.mxu0 0.0
        %299 = vmatprep.subr.mxu0 0.0
        %300 = vmatpush1.msra.mxu0 0.0
        %301 = vmatprep.subr.mxu0 0.0
        %302 = vmatpush1.msra.mxu0 0.0
        %303 = vmatprep.subr.mxu0 0.0
        %304 = vmatpush1.msra.mxu0 0.0
        %305 = vmatprep.subr.mxu0 0.0
        %306 = vmatpush1.msra.mxu0 0.0
        %307 = vmatprep.subr.mxu0 0.0
        %308 = vmatpush1.msra.mxu0 0.0
        %309 = vmatprep.subr.mxu0 0.0
        %310 = vmatpush1.msra.mxu0 0.0
        %311 = vmatprep.subr.mxu0 0.0
        %312 = vmatpush1.msra.mxu0 0.0
        %313 = vmatprep.subr.mxu0 0.0
        %314 = vmatpush1.msra.mxu0 0.0
        %315 = vmatprep.subr.mxu0 0.0
        %316 = vmatpush1.msra.mxu0 0.0
        %317 = vmatprep.subr.mxu0 0.0
        %318 = vmatpush1.msra.mxu0 0.0
        %319 = vmatprep.subr.mxu0 0.0
        %320 = vmatpush1.msra.mxu0 0.0
        %321 = vmatprep.subr.mxu0 0.0
        %322 = vmatpush1.msra.mxu0 0.0
        %323 = vmatprep.mubr.f32.mxu0 0.0
        %324 = vmatmul.mubr.f32.gmra.mrb[0].mxu0 %v254
        %v325 = vpop.f32.mrb[0].mxu0
        %v326 = vadd.f32 0.0, %v325
        %v327 = vpop.f32.mrb[0].mxu0
        %328 = vmatprep.mubr.f32.mxu0 0.0
        %329 = vmatmul.mubr.f32.gmra.mrb[0].mxu0 %v257
        %v330 = vpop.f32.mrb[0].mxu0
        %v331 = vadd.f32 0.0, %v330
        %v332 = vpop.f32.mrb[0].mxu0
        %333 = vdwg.mxu0
        %s334 = scalar_lea.vmem [#allocation5], 64
        %v335 = vld [vmem:[%s334] sm:$0xff]
        %v336 = vld [vmem:[%s334 + $0x8] sm:$0xff]
        %v337 = vld [vmem:[%s334 + $0x10] sm:$0xff]
        %v338 = vld [vmem:[%s334 + $0x18] sm:$0xff]
        %v339 = vld [vmem:[%s334 + $0x20] sm:$0xff]
        %v340 = vld [vmem:[%s334 + $0x28] sm:$0xff]
        %v341 = vld [vmem:[%s334 + $0x30] sm:$0xff]
        %v342 = vld [vmem:[%s334 + $0x38] sm:$0xff]
        %343 = vmatprep.subr.mxu0 0.0
        %344 = vmatpush1.msra.mxu0 %v335
        %345 = vmatprep.subr.mxu0 0.0
        %346 = vmatpush1.msra.mxu0 %v336
        %347 = vmatprep.subr.mxu0 0.0
        %348 = vmatpush1.msra.mxu0 %v337
        %349 = vmatprep.subr.mxu0 0.0
        %350 = vmatpush1.msra.mxu0 %v338
        %351 = vmatprep.subr.mxu0 0.0
        %352 = vmatpush1.msra.mxu0 %v339
        %353 = vmatprep.subr.mxu0 0.0
        %354 = vmatpush1.msra.mxu0 %v340
        %355 = vmatprep.subr.mxu0 0.0
        %356 = vmatpush1.msra.mxu0 %v341
        %357 = vmatprep.subr.mxu0 0.0
        %358 = vmatpush1.msra.mxu0 %v342
        %359 = vmatprep.subr.mxu0 0.0
        %360 = vmatpush1.msra.mxu0 0.0
        %361 = vmatprep.subr.mxu0 0.0
        %362 = vmatpush1.msra.mxu0 0.0
        %363 = vmatprep.subr.mxu0 0.0
        %364 = vmatpush1.msra.mxu0 0.0
        %365 = vmatprep.subr.mxu0 0.0
        %366 = vmatpush1.msra.mxu0 0.0
        %367 = vmatprep.subr.mxu0 0.0
        %368 = vmatpush1.msra.mxu0 0.0
        %369 = vmatprep.subr.mxu0 0.0
        %370 = vmatpush1.msra.mxu0 0.0
        %371 = vmatprep.subr.mxu0 0.0
        %372 = vmatpush1.msra.mxu0 0.0
        %373 = vmatprep.subr.mxu0 0.0
        %374 = vmatpush1.msra.mxu0 0.0
        %375 = vmatprep.subr.mxu0 0.0
        %376 = vmatpush1.msra.mxu0 0.0
        %377 = vmatprep.subr.mxu0 0.0
        %378 = vmatpush1.msra.mxu0 0.0
        %379 = vmatprep.subr.mxu0 0.0
        %380 = vmatpush1.msra.mxu0 0.0
        %381 = vmatprep.subr.mxu0 0.0
        %382 = vmatpush1.msra.mxu0 0.0
        %383 = vmatprep.subr.mxu0 0.0
        %384 = vmatpush1.msra.mxu0 0.0
        %385 = vmatprep.subr.mxu0 0.0
        %386 = vmatpush1.msra.mxu0 0.0
        %387 = vmatprep.subr.mxu0 0.0
        %388 = vmatpush1.msra.mxu0 0.0
        %389 = vmatprep.subr.mxu0 0.0
        %390 = vmatpush1.msra.mxu0 0.0
        %391 = vmatprep.subr.mxu0 0.0
        %392 = vmatpush1.msra.mxu0 0.0
        %393 = vmatprep.subr.mxu0 0.0
        %394 = vmatpush1.msra.mxu0 0.0
        %395 = vmatprep.subr.mxu0 0.0
        %396 = vmatpush1.msra.mxu0 0.0
        %397 = vmatprep.subr.mxu0 0.0
        %398 = vmatpush1.msra.mxu0 0.0
        %399 = vmatprep.subr.mxu0 0.0
        %400 = vmatpush1.msra.mxu0 0.0
        %401 = vmatprep.subr.mxu0 0.0
        %402 = vmatpush1.msra.mxu0 0.0
        %403 = vmatprep.subr.mxu0 0.0
        %404 = vmatpush1.msra.mxu0 0.0
        %405 = vmatprep.subr.mxu0 0.0
        %406 = vmatpush1.msra.mxu0 0.0
        %407 = vmatprep.mubr.f32.mxu0 0.0
        %408 = vmatmul.mubr.f32.gmra.mrb[0].mxu0 %v254
        %v409 = vpop.f32.mrb[0].mxu0
        %v410 = vadd.f32 0.0, %v409
        %v411 = vpop.f32.mrb[0].mxu0
        %412 = vmatprep.mubr.f32.mxu0 0.0
        %413 = vmatmul.mubr.f32.gmra.mrb[0].mxu0 %v257
        %v414 = vpop.f32.mrb[0].mxu0
        %v415 = vadd.f32 0.0, %v414
        %v416 = vpop.f32.mrb[0].mxu0
        %417 = vdwg.mxu0
        %s418 = scalar_lea.vmem [#allocation5], 128
        %v419 = vld [vmem:[%s418] sm:$0xff]
        %v420 = vld [vmem:[%s418 + $0x8] sm:$0xff]
        %v421 = vld [vmem:[%s418 + $0x10] sm:$0xff]
        %v422 = vld [vmem:[%s418 + $0x18] sm:$0xff]
        %v423 = vld [vmem:[%s418 + $0x20] sm:$0xff]
        %v424 = vld [vmem:[%s418 + $0x28] sm:$0xff]
        %v425 = vld [vmem:[%s418 + $0x30] sm:$0xff]
        %v426 = vld [vmem:[%s418 + $0x38] sm:$0xff]
        %427 = vmatprep.subr.mxu0 0.0
        %428 = vmatpush1.msra.mxu0 %v419
        %429 = vmatprep.subr.mxu0 0.0
        %430 = vmatpush1.msra.mxu0 %v420
        %431 = vmatprep.subr.mxu0 0.0
        %432 = vmatpush1.msra.mxu0 %v421
        %433 = vmatprep.subr.mxu0 0.0
        %434 = vmatpush1.msra.mxu0 %v422
        %435 = vmatprep.subr.mxu0 0.0
        %436 = vmatpush1.msra.mxu0 %v423
        %437 = vmatprep.subr.mxu0 0.0
        %438 = vmatpush1.msra.mxu0 %v424
        %439 = vmatprep.subr.mxu0 0.0
        %440 = vmatpush1.msra.mxu0 %v425
        %441 = vmatprep.subr.mxu0 0.0
        %442 = vmatpush1.msra.mxu0 %v426
        %443 = vmatprep.subr.mxu0 0.0
        %444 = vmatpush1.msra.mxu0 0.0
        %445 = vmatprep.subr.mxu0 0.0
        %446 = vmatpush1.msra.mxu0 0.0
        %447 = vmatprep.subr.mxu0 0.0
        %448 = vmatpush1.msra.mxu0 0.0
        %449 = vmatprep.subr.mxu0 0.0
        %450 = vmatpush1.msra.mxu0 0.0
        %451 = vmatprep.subr.mxu0 0.0
        %452 = vmatpush1.msra.mxu0 0.0
        %453 = vmatprep.subr.mxu0 0.0
        %454 = vmatpush1.msra.mxu0 0.0
        %455 = vmatprep.subr.mxu0 0.0
        %456 = vmatpush1.msra.mxu0 0.0
        %457 = vmatprep.subr.mxu0 0.0
        %458 = vmatpush1.msra.mxu0 0.0
        %459 = vmatprep.subr.mxu0 0.0
        %460 = vmatpush1.msra.mxu0 0.0
        %461 = vmatprep.subr.mxu0 0.0
        %462 = vmatpush1.msra.mxu0 0.0
        %463 = vmatprep.subr.mxu0 0.0
        %464 = vmatpush1.msra.mxu0 0.0
        %465 = vmatprep.subr.mxu0 0.0
        %466 = vmatpush1.msra.mxu0 0.0
        %467 = vmatprep.subr.mxu0 0.0
        %468 = vmatpush1.msra.mxu0 0.0
        %469 = vmatprep.subr.mxu0 0.0
        %470 = vmatpush1.msra.mxu0 0.0
        %471 = vmatprep.subr.mxu0 0.0
        %472 = vmatpush1.msra.mxu0 0.0
        %473 = vmatprep.subr.mxu0 0.0
        %474 = vmatpush1.msra.mxu0 0.0
        %475 = vmatprep.subr.mxu0 0.0
        %476 = vmatpush1.msra.mxu0 0.0
        %477 = vmatprep.subr.mxu0 0.0
        %478 = vmatpush1.msra.mxu0 0.0
        %479 = vmatprep.subr.mxu0 0.0
        %480 = vmatpush1.msra.mxu0 0.0
        %481 = vmatprep.subr.mxu0 0.0
        %482 = vmatpush1.msra.mxu0 0.0
        %483 = vmatprep.subr.mxu0 0.0
        %484 = vmatpush1.msra.mxu0 0.0
        %485 = vmatprep.subr.mxu0 0.0
        %486 = vmatpush1.msra.mxu0 0.0
        %487 = vmatprep.subr.mxu0 0.0
        %488 = vmatpush1.msra.mxu0 0.0
        %489 = vmatprep.subr.mxu0 0.0
        %490 = vmatpush1.msra.mxu0 0.0
        %491 = vmatprep.mubr.f32.mxu0 0.0
        %492 = vmatmul.mubr.f32.gmra.mrb[0].mxu0 %v254
        %v493 = vpop.f32.mrb[0].mxu0
        %v494 = vadd.f32 0.0, %v493
        %v495 = vpop.f32.mrb[0].mxu0
        %496 = vmatprep.mubr.f32.mxu0 0.0
        %497 = vmatmul.mubr.f32.gmra.mrb[0].mxu0 %v257
        %v498 = vpop.f32.mrb[0].mxu0
        %v499 = vadd.f32 0.0, %v498
        %v500 = vpop.f32.mrb[0].mxu0
        %501 = vdwg.mxu0
        %v502 = vlaneseq
        %v503 = vshrl.u32 %v502, 7
        %v504 = vadd.s32 %v503, 8
        %vm505 = vcmp.lt.s32.totalorder %v503, 0
        %v506 = vsub.s32 0, %v503
        %v507 = vsel %vm505, %v506, %v503
        %v508 = vshrl.u32 %v507, 4
        %v509 = vand.u32 %v507, 15
        %v510 = vsub.s32 0, %v509
        %v511 = vsel %vm505, %v510, %v509
        %vm512 = vcmp.lt.s32.totalorder %v504, 0
        %v513 = vsub.s32 0, %v504
        %v514 = vsel %vm512, %v513, %v504
        %v515 = vshrl.u32 %v514, 4
        %v516 = vand.u32 %v514, 15
        %v517 = vsub.s32 0, %v516
        %v518 = vsel %vm512, %v517, %v516
        %vm519 = vcmp.ne.s32.totalorder %v511, 0
        %vm520 = vcmp.ne.s32.totalorder %v518, 0
        %vm521 = vcmp.lt.s32.totalorder %v511, 0
        %vm522 = vcmp.lt.s32.totalorder %v518, 0
        %vm523 = vmand %vm521, %vm519
        %vm524 = vmand %vm522, %vm520
        %v525 = vadd.s32 %v511, 16
        %v526 = vadd.s32 %v518, 16
        %v527 = vsel %vm523, %v525, %v511
        %v528 = vsel %vm524, %v526, %v518
        %vm529 = vcmp.eq.s32.totalorder %v527, 0
        %vm530 = vcmp.eq.s32.totalorder %v528, 0
        %v531 = vrot.slane %v326, 7
        %v532 = vrot.slane %v331, 7
        %vm533 = vcmp.lt.s32.totalorder %v503, 1
        %v534 = vsel %vm533, %v531, %v532
        %v535 = vsel %vm533, %v532, %v531
        %v536 = vsel %vm529, 0.0, %v535
        %v537 = vsel %vm530, 0.0, %v534
        %vm538 = vcmp.eq.s32.totalorder %v527, 15
        %vm539 = vcmp.eq.s32.totalorder %v528, 15
        %v540 = vrot.slane %v494, 1
        %v541 = vrot.slane %v499, 1
        %vm542 = vcmp.lt.s32.totalorder %v503, 7
        %v543 = vsel %vm542, %v540, %v541
        %v544 = vsel %vm542, %v541, %v540
        %v545 = vsel %vm538, 0.0, %v543
        %v546 = vsel %vm539, 0.0, %v544
        %v547 = vadd.f32 %v536, %v410
        %v548 = vadd.f32 %v537, %v415
        %v549 = vadd.f32 %v547, %v545
        %v550 = vadd.f32 %v548, %v546
        %v552 = vlaneseq
        %v553 = vshrl.u32 %v552, 7
        %v554 = vsub.s32 0, %v553
        %v555 = vrot.slane %v243, %v554
        %v557 = vadd.f32 %v549, %v555
        %v558 = vadd.f32 %v550, %v555
        %v559 = vadd.f32 %v557, %v558
        %v560 = vrot.slane %v559, 4
        %v561 = vadd.f32 %v559, %v560
        %v562 = vrot.slane %v561, 2
        %v563 = vadd.f32 %v561, %v562
        %v564 = vrot.slane %v563, 1
        %v565 = vadd.f32 %v563, %v564
        %566 = vst [vmem:[%s233] sm:$0x1] %v565
        %v567 = vmul.f32 %v557, %v557
        %v568 = vmul.f32 %v558, %v558
        %v569 = vadd.f32 %v567, %v568
        %v570 = vrot.slane %v569, 4
        %v571 = vadd.f32 %v569, %v570
        %v572 = vrot.slane %v571, 2
        %v573 = vadd.f32 %v571, %v572
        %v574 = vrot.slane %v573, 1
        %v575 = vadd.f32 %v573, %v574
        %576 = vst [vmem:[%s239] sm:$0x1] %v575
        %s577 = sand.u32 %s102, 1
        %s578 = scalar_lea.sflag [#allocation4], %s577
        %s579 = sand.u32 %s102, 1
        %s580 = scalar_lea.vmem [#allocation7], %s579
        %s581 = sand.u32 %s128, 1
        %s582 = scalar_lea.sflag [#allocation9], %s581
        %s583 = sand.u32 %s128, 1
        %s584 = scalar_lea.vmem [#allocation8], %s583
        // Predicated region
        $region41: #{tpu_custom_call.1} parent=31 // pred_check
          %p585 = pneg %p112
        $region42: #{tpu_custom_call.1} parent=31 // pred_check_branch
          %587 = sbr.rel (%p585) target = $region44
        $region43: #{tpu_custom_call.1} parent=31 // pred_region
          %s589 = ssub.s32 16, 16
          %590 = vsyncadd %s578, %s589
          %s591 = smul.addr %s26, 16
          %s592 = scalar_lea.hbm %s3, %s591
          %s594 = sshll.u32 %s580, 4
          %s595 = int_to_ptr.vmem [resolvable:$true] %s594
          %597 = dma.vmem_to_hbm [thread:$0]  %s595, 16, %s592, %s578
        $region44: #{tpu_custom_call.1} parent=31 // pred_fallthru
          _
        // Predicated region
        $region45: #{tpu_custom_call.1} parent=31 // pred_check
          %p598 = pneg %p138
        $region46: #{tpu_custom_call.1} parent=31 // pred_check_branch
          %600 = sbr.rel (%p598) target = $region48
        $region47: #{tpu_custom_call.1} parent=31 // pred_region
          %s602 = ssub.s32 16, 16
          %603 = vsyncadd %s582, %s602
          %s604 = smul.addr %s26, 16
          %s605 = scalar_lea.hbm %s4, %s604
          %s607 = sshll.u32 %s584, 4
          %s608 = int_to_ptr.vmem [resolvable:$true] %s607
          %610 = dma.vmem_to_hbm [thread:$0]  %s608, 16, %s605, %s582
        $region48: #{tpu_custom_call.1} parent=31 // pred_fallthru
          _
      $region32: #{tpu_custom_call.1} parent=5 // pred_fallthru
        _
      %p611 = scmp.le.s32.totalorder 2, %s21
      // Predicated region
      $region49: #{tpu_custom_call.1} parent=5 // pred_check
        %p612 = pneg %p611
      $region50: #{tpu_custom_call.1} parent=5 // pred_check_branch
        %614 = sbr.rel (%p612) target = $region52
      $region51: #{tpu_custom_call.1} parent=5 // pred_region
        %s615 = ssub.s32 %s21, 2
        // Predicated region
        $region53: #{tpu_custom_call.1} parent=51 // pred_check
          %p616 = pneg %p118
        $region54: #{tpu_custom_call.1} parent=51 // pred_check_branch
          %618 = sbr.rel (%p616) target = $region56
        $region55: #{tpu_custom_call.1} parent=51 // pred_region
          %s619 = sand.u32 %s103, 1
          %s620 = scalar_lea.sflag [#allocation4], %s619
          %s621 = sand.u32 %s103, 1
          %s622 = scalar_lea.vmem [#allocation7], %s621
          %623 = dma.done %s620, 16
        $region56: #{tpu_custom_call.1} parent=51 // pred_fallthru
          _
        // Predicated region
        $region57: #{tpu_custom_call.1} parent=51 // pred_check
          %p624 = pneg %p144
        $region58: #{tpu_custom_call.1} parent=51 // pred_check_branch
          %626 = sbr.rel (%p624) target = $region60
        $region59: #{tpu_custom_call.1} parent=51 // pred_region
          %s627 = sand.u32 %s129, 1
          %s628 = scalar_lea.sflag [#allocation9], %s627
          %s629 = sand.u32 %s129, 1
          %s630 = scalar_lea.vmem [#allocation8], %s629
          %631 = dma.done %s628, 16
        $region60: #{tpu_custom_call.1} parent=51 // pred_fallthru
          _
      $region52: #{tpu_custom_call.1} parent=5 // pred_fallthru
        _
    $region6: #{tpu_custom_call.1} parent=1 // loop_footer
      %s25 = sadd.s32 1, %s21
    $region7: #{tpu_custom_call.1} parent=1 // loop_footer_branch
      %20 = sbr.rel target = $region3
    $region8: #{tpu_custom_call.1} parent=1 // loop_exit
      _
    %632 = vsyncpa [#allocation3], 1
    %s633 = scalar_lea.sflag [#allocation3], 1
    %634 = vsyncpa %s633, 1
    %635 = vsyncpa [#allocation6], 1
    %636 = vsyncpa [#allocation4], 1
    %s637 = scalar_lea.sflag [#allocation4], 1
    %638 = vsyncpa %s637, 1
    %639 = vsyncpa [#allocation9], 1
    %s640 = scalar_lea.sflag [#allocation9], 1
    %641 = vsyncpa %s640, 1

</llo_original>
